<compile_context>
chip_gen: v7x
topology: tpu7x:2x2x1
jax: 0.10.0
libtpu: 0.0.40
codegen_flags: <defaults>
</compile_context>

<pallas_src>
import functools

import jax
import jax.numpy as jnp
from jax.experimental import pallas as pl
from jax.experimental.pallas import tpu as pltpu


def _round_up(n, m):
    return ((n + m - 1) // m) * m


def _fused_mlp_kernel(*refs, num_fc):
    """Fused MLP on one batch tile: num_fc x (linear+ReLU) then 1-wide linear.

    refs = (x_ref, w0, b0, ..., w_{L-1}, b_{L-1}, w_out, b_out, o_ref)
    """
    x_ref = refs[0]
    o_ref = refs[-1]
    params = refs[1:-1]

    h = x_ref[...]  # (block_b, in_dim) f32
    # Unrolled hidden layers (num_fc is a static Python int).
    for layer in range(num_fc):
        w = params[2 * layer][...]        # (in_dim, hidden)
        b = params[2 * layer + 1][...]    # (1, hidden)
        h = jnp.dot(h, w, preferred_element_type=jnp.float32) + b
        h = jnp.maximum(h, 0.0)

    w_out = params[2 * num_fc][...]       # (1, hidden)  -- PyTorch layout row
    b_out = params[2 * num_fc + 1][...]   # (1, 1)
    # output_size == 1: VPU reduction instead of a 1-column MXU matmul.
    logits = jnp.sum(h * w_out, axis=-1, keepdims=True) + b_out  # (block_b, 1)
    o_ref[...] = logits.astype(o_ref.dtype)


def output_layer_forward(x, params, *, block_b=256):
    """Multi-layer FC: (ReLU linear) * nFCLayers, then final linear (logits)."""
    batch, in_dim = x.shape
    fc = params["fc"]
    w_out, b_out = params["out"]          # (1, hidden), (1, 1)
    out_size = w_out.shape[0]             # == 1 for this module
    num_fc = len(fc)

    # Batch tiling: sublane-aligned tile, pad batch up to a multiple of it.
    block_b = min(block_b, _round_up(batch, 8))
    padded = _round_up(batch, block_b)
    if padded != batch:
        x = jnp.pad(x, ((0, padded - batch), (0, 0)))

    flat_params = []
    in_specs = [pl.BlockSpec((block_b, in_dim), lambda i: (i, 0))]
    for w, b in fc:
        flat_params += [w, b]
        # Weights/biases: constant block index -> fetched once, stay resident.
        in_specs += [pl.BlockSpec(w.shape, lambda i: (0, 0)),
                     pl.BlockSpec(b.shape, lambda i: (0, 0))]
    flat_params += [w_out, b_out]
    in_specs += [pl.BlockSpec(w_out.shape, lambda i: (0, 0)),
                 pl.BlockSpec(b_out.shape, lambda i: (0, 0))]

    out = pl.pallas_call(
        functools.partial(_fused_mlp_kernel, num_fc=num_fc),
        out_shape=jax.ShapeDtypeStruct((padded, out_size), x.dtype),
        grid=(padded // block_b,),
        in_specs=in_specs,
        out_specs=pl.BlockSpec((block_b, out_size), lambda i: (i, 0)),
        compiler_params=pltpu.CompilerParams(
            dimension_semantics=("parallel",)),
    )(x, *flat_params)
    return out[:batch]


def init_output_layer_params(key, input_size, hidden_size, num_layers,
                             output_size=1, dtype=jnp.float32):
    """Deterministic synthetic init (stand-in for init_word / xavier etc.)."""
    assert output_size == 1  # module fixes output_size = 1
    params = {"fc": [], "out": None}
    in_dim = input_size
    for _ in range(num_layers):
        key, wk = jax.random.split(key)
        w = jax.random.normal(wk, (in_dim, hidden_size), dtype) * 0.1
        b = jnp.zeros((1, hidden_size), dtype)     # init.constant(bias, 0)
        params["fc"].append((w, b))
        in_dim = hidden_size
    key, wk = jax.random.split(key)
    w_out = jax.random.normal(wk, (output_size, in_dim), dtype) * 0.1  # (1, in)
    b_out = jnp.zeros((1, output_size), dtype)
    params["out"] = (w_out, b_out)
    return params


def _reference_forward(x, params):
    ref = x
    for w, b in params["fc"]:
        ref = jnp.maximum(ref @ w + b, 0.0)
    w_out, b_out = params["out"]
    return ref @ w_out.T + b_out


if __name__ == "__main__":
    # opt: bidirectional=True, hiddenSize=16 -> input_size=32,
    #      linearSize=32, nFCLayers=2, output_size=1, logit=True
    hidden_rnn = 16
    input_size = 2 * hidden_rnn      # num_directions = 2
    linear_size = 32
    n_fc_layers = 2

    key = jax.random.PRNGKey(0)
    key, pk = jax.random.split(key)
    params = init_output_layer_params(pk, input_size, linear_size, n_fc_layers)

    # Case 1: tiny batch, single grid step.
    key, xk = jax.random.split(key)
    x_small = jax.random.normal(xk, (8, input_size), jnp.float32)
    out_small = jax.block_until_ready(output_layer_forward(x_small, params))
    ref_small = _reference_forward(x_small, params)
    assert out_small.shape == (8, 1)
    assert jnp.allclose(out_small, ref_small, atol=1e-5, rtol=1e-5)

    # Case 2: exercises the batch grid (>1 step) and the padding path.
    key, xk = jax.random.split(key)
    x_big = jax.random.normal(xk, (200, input_size), jnp.float32)
    out_big = jax.block_until_ready(
        output_layer_forward(x_big, params, block_b=128))
    ref_big = _reference_forward(x_big, params)
    assert out_big.shape == (200, 1)
    assert jnp.allclose(out_big, ref_big, atol=1e-5, rtol=1e-5)

    print("KERNEL_OK")
</pallas_src>

<mosaic_0001>
module attributes {stable_mosaic.version = 11 : i64} {
  func.func @_fused_mlp_kernel(%arg0: i32, %arg1: memref<8x32xf32, #tpu.memory_space<vmem>>, %arg2: memref<32x32xf32, #tpu.memory_space<vmem>>, %arg3: memref<1x32xf32, #tpu.memory_space<vmem>>, %arg4: memref<32x32xf32, #tpu.memory_space<vmem>>, %arg5: memref<1x32xf32, #tpu.memory_space<vmem>>, %arg6: memref<1x32xf32, #tpu.memory_space<vmem>>, %arg7: memref<1x1xf32, #tpu.memory_space<vmem>>, %arg8: memref<8x1xf32, #tpu.memory_space<vmem>>) attributes {dimension_semantics = [#tpu.dimension_semantics<parallel>], iteration_bounds = array<i64: 1>, scalar_prefetch = 0 : i64, scratch_operands = 0 : i64, tpu.core_type = #tpu.core_type<tc>, window_params = [{transform_indices = @transform_0, window_bounds = array<i64: 8, 32>}, {pipeline_mode = #tpu.pipeline_mode<synchronous>, transform_indices = @transform_1, window_bounds = array<i64: 32, 32>}, {pipeline_mode = #tpu.pipeline_mode<synchronous>, transform_indices = @transform_2, window_bounds = array<i64: 1, 32>}, {pipeline_mode = #tpu.pipeline_mode<synchronous>, transform_indices = @transform_3, window_bounds = array<i64: 32, 32>}, {pipeline_mode = #tpu.pipeline_mode<synchronous>, transform_indices = @transform_4, window_bounds = array<i64: 1, 32>}, {pipeline_mode = #tpu.pipeline_mode<synchronous>, transform_indices = @transform_5, window_bounds = array<i64: 1, 32>}, {pipeline_mode = #tpu.pipeline_mode<synchronous>, transform_indices = @transform_6, window_bounds = array<i64: 1, 1>}, {transform_indices = @transform_7, window_bounds = array<i64: 8, 1>}]} {
    %c0 = arith.constant 0 : index
    %c0_0 = arith.constant 0 : index
    %0 = vector.load %arg1[%c0, %c0_0] : memref<8x32xf32, #tpu.memory_space<vmem>>, vector<8x32xf32>
    %c0_1 = arith.constant 0 : index
    %c0_2 = arith.constant 0 : index
    %1 = vector.load %arg2[%c0_1, %c0_2] : memref<32x32xf32, #tpu.memory_space<vmem>>, vector<32x32xf32>
    %c0_3 = arith.constant 0 : index
    %c0_4 = arith.constant 0 : index
    %2 = vector.load %arg3[%c0_3, %c0_4] : memref<1x32xf32, #tpu.memory_space<vmem>>, vector<1x32xf32>
    %cst = arith.constant dense<0.000000e+00> : vector<8x32xf32>
    %3 = tpu.matmul %0, %1, %cst {dimension_numbers = #tpu.dot_dimension_numbers<[1], [0], [0], [1], [0, 0, 1, 1], [], []>} : vector<8x32xf32>, vector<32x32xf32>, vector<8x32xf32> -> vector<8x32xf32>
    %4 = vector.broadcast %2 : vector<1x32xf32> to vector<8x32xf32>
    %5 = arith.addf %3, %4 : vector<8x32xf32>
    %cst_5 = arith.constant 0.000000e+00 : f32
    %6 = vector.broadcast %cst_5 : f32 to vector<8x32xf32>
    %7 = arith.maximumf %5, %6 : vector<8x32xf32>
    %c0_6 = arith.constant 0 : index
    %c0_7 = arith.constant 0 : index
    %8 = vector.load %arg4[%c0_6, %c0_7] : memref<32x32xf32, #tpu.memory_space<vmem>>, vector<32x32xf32>
    %c0_8 = arith.constant 0 : index
    %c0_9 = arith.constant 0 : index
    %9 = vector.load %arg5[%c0_8, %c0_9] : memref<1x32xf32, #tpu.memory_space<vmem>>, vector<1x32xf32>
    %cst_10 = arith.constant dense<0.000000e+00> : vector<8x32xf32>
    %10 = tpu.matmul %7, %8, %cst_10 {dimension_numbers = #tpu.dot_dimension_numbers<[1], [0], [0], [1], [0, 0, 1, 1], [], []>} : vector<8x32xf32>, vector<32x32xf32>, vector<8x32xf32> -> vector<8x32xf32>
    %11 = vector.broadcast %9 : vector<1x32xf32> to vector<8x32xf32>
    %12 = arith.addf %10, %11 : vector<8x32xf32>
    %cst_11 = arith.constant 0.000000e+00 : f32
    %13 = vector.broadcast %cst_11 : f32 to vector<8x32xf32>
    %14 = arith.maximumf %12, %13 : vector<8x32xf32>
    %c0_12 = arith.constant 0 : index
    %c0_13 = arith.constant 0 : index
    %15 = vector.load %arg6[%c0_12, %c0_13] : memref<1x32xf32, #tpu.memory_space<vmem>>, vector<1x32xf32>
    %c0_14 = arith.constant 0 : index
    %c0_15 = arith.constant 0 : index
    %16 = vector.load %arg7[%c0_14, %c0_15] : memref<1x1xf32, #tpu.memory_space<vmem>>, vector<1x1xf32>
    %17 = vector.broadcast %15 : vector<1x32xf32> to vector<8x32xf32>
    %18 = arith.mulf %14, %17 : vector<8x32xf32>
    %cst_16 = arith.constant dense<0.000000e+00> : vector<8xf32>
    %19 = vector.multi_reduction <add>, %18, %cst_16 [1] : vector<8x32xf32> to vector<8xf32>
    %20 = vector.shape_cast %19 : vector<8xf32> to vector<8x1xf32>
    %21 = vector.broadcast %16 : vector<1x1xf32> to vector<8x1xf32>
    %22 = arith.addf %20, %21 : vector<8x1xf32>
    %c0_17 = arith.constant 0 : index
    %c0_18 = arith.constant 0 : index
    %23 = vector.load %arg8[%c0_17, %c0_18] : memref<8x1xf32, #tpu.memory_space<vmem>>, vector<8x1xf32>
    tpu.vector_store %arg8[%c0_17, %c0_18], %22 {strides = array<i32>} : memref<8x1xf32, #tpu.memory_space<vmem>>, vector<8x1xf32>,
    return
  }
  func.func @transform_0(%arg0: i32) -> (i32, i32) {
    %c0_i32 = arith.constant 0 : i32
    %c0_i32_0 = arith.constant 0 : i32
    return %arg0, %c0_i32 : i32, i32
  }
  func.func @transform_1(%arg0: i32) -> (i32, i32) {
    %c0_i32 = arith.constant 0 : i32
    %c0_i32_0 = arith.constant 0 : i32
    %c0_i32_1 = arith.constant 0 : i32
    return %c0_i32, %c0_i32_0 : i32, i32
  }
  func.func @transform_2(%arg0: i32) -> (i32, i32) {
    %c0_i32 = arith.constant 0 : i32
    %c0_i32_0 = arith.constant 0 : i32
    %c0_i32_1 = arith.constant 0 : i32
    return %c0_i32, %c0_i32_0 : i32, i32
  }
  func.func @transform_3(%arg0: i32) -> (i32, i32) {
    %c0_i32 = arith.constant 0 : i32
    %c0_i32_0 = arith.constant 0 : i32
    %c0_i32_1 = arith.constant 0 : i32
    return %c0_i32, %c0_i32_0 : i32, i32
  }
  func.func @transform_4(%arg0: i32) -> (i32, i32) {
    %c0_i32 = arith.constant 0 : i32
    %c0_i32_0 = arith.constant 0 : i32
    %c0_i32_1 = arith.constant 0 : i32
    return %c0_i32, %c0_i32_0 : i32, i32
  }
  func.func @transform_5(%arg0: i32) -> (i32, i32) {
    %c0_i32 = arith.constant 0 : i32
    %c0_i32_0 = arith.constant 0 : i32
    %c0_i32_1 = arith.constant 0 : i32
    return %c0_i32, %c0_i32_0 : i32, i32
  }
  func.func @transform_6(%arg0: i32) -> (i32, i32) {
    %c0_i32 = arith.constant 0 : i32
    %c0_i32_0 = arith.constant 0 : i32
    %c0_i32_1 = arith.constant 0 : i32
    return %c0_i32, %c0_i32_0 : i32, i32
  }
  func.func @transform_7(%arg0: i32) -> (i32, i32) {
    %c0_i32 = arith.constant 0 : i32
    %c0_i32_0 = arith.constant 0 : i32
    return %arg0, %c0_i32 : i32, i32
  }
}

</mosaic_0001>

<llo_original>
// kernel: tpu_custom_call.1
$region0: #{tpu_custom_call.1}
  #allocation0 [shape = 'u32[]', space=smem, size = 0x4, offset = 0x4, fixed_abs, tag = 'smem constant byte address 0x4 - core index']
  #allocation1 [shape = 'u32[144,128]{1,0:T(1,128)}', space=vmem, size = 0x12000, scoped, tag = 'internal scratch']
  #allocation2 [shape = 'f32[1,1]{1,0:T(1,128)S(1)}', space=vmem, size = 0x200, scoped, tag = 'scoped memory for tpu_custom_call.1']
  %s0 = inlined_call_operand.hbm [shape: f32[8,32], index: 0, kind: input, shape index: {}]
  %s1 = inlined_call_operand.hbm [shape: f32[32,32], index: 1, kind: input, shape index: {}]
  %s2 = inlined_call_operand.vmem [shape: f32[1,32], index: 2, kind: input, shape index: {}]
  %s3 = inlined_call_operand.hbm [shape: f32[32,32], index: 3, kind: input, shape index: {}]
  %s4 = inlined_call_operand.vmem [shape: f32[1,32], index: 4, kind: input, shape index: {}]
  %s5 = inlined_call_operand.vmem [shape: f32[1,32], index: 5, kind: input, shape index: {}]
  %s6 = inlined_call_operand.<no memory space> [shape: f32[1,1], index: 6, kind: input, shape index: {}]
  %s7 = inlined_call_operand.vmem [shape: f32[8,1], index: 7, kind: output, shape index: {}]
  %s8 = sld [smem:[#allocation0]]
  $region50: #{tpu_custom_call.1} parent=0
    _
  %s10 = ssub.s32 1, %s8
  %s11 = scalar_select 0, %s10, %s8
  %v12 = vstv %s6
  %13 = vst [vmem:[#allocation2] sm:$0x1] %v12
  $region1: #{tpu_custom_call.1} parent=0
    #allocation3 [shape = 'u8[4096]{0}', space=vmem, size = 0x1000, scoped, tag = 'input window, operand 0, single buffered']
    #allocation4 [shape = 's32[1]{0}', space=sflag, size = 0x4, scoped, tag = 'scoped memory for tpu_custom_call.1']
    #allocation5 [shape = 'u8[16384]{0}', space=vmem, size = 0x4000, scoped, tag = 'input window, operand 1, single buffered']
    #allocation6 [shape = 's32[1]{0}', space=sflag, size = 0x4, scoped, tag = 'scoped memory for tpu_custom_call.1']
    #allocation7 [shape = 'u8[16384]{0}', space=vmem, size = 0x4000, scoped, tag = 'input window, operand 3, single buffered']
    %14 = vsyncpa [#allocation4], 0
    %15 = vsyncpa [#allocation6], 0
    // Predicated region
    $region2: #{tpu_custom_call.1} parent=1 // pred_check
      _
    $region3: #{tpu_custom_call.1} parent=1 // pred_check_branch
      %17 = sbr.rel (0) target = $region5
    $region4: #{tpu_custom_call.1} parent=1 // pred_region
      %s19 = ssub.s32 128, 128
      %20 = vsyncadd [#allocation4], %s19
      %s22 = sshll.u32 [#allocation3], 4
      %s23 = int_to_ptr.vmem [resolvable:$true] %s22
      %25 = dma.hbm_to_vmem [thread:$0]  %s0, 128, %s23, [#allocation4]
    $region5: #{tpu_custom_call.1} parent=1 // pred_fallthru
      _
    // Predicated region
    $region6: #{tpu_custom_call.1} parent=1 // pred_check
      _
    $region7: #{tpu_custom_call.1} parent=1 // pred_check_branch
      %27 = sbr.rel (0) target = $region9
    $region8: #{tpu_custom_call.1} parent=1 // pred_region
      %s29 = ssub.s32 512, 512
      %30 = vsyncadd [#allocation6], %s29
      %s31 = sshll.u32 [#allocation5], 4
      %s32 = int_to_ptr.vmem [resolvable:$true] %s31
      %37 = dma.hbm_to_vmem [thread:$0]  %s1, 512, %s32, [#allocation6], 128, 128, 8
    $region9: #{tpu_custom_call.1} parent=1 // pred_fallthru
      _
    // Predicated region
    $region10: #{tpu_custom_call.1} parent=1 // pred_check
      _
    $region11: #{tpu_custom_call.1} parent=1 // pred_check_branch
      %39 = sbr.rel (0) target = $region13
    $region12: #{tpu_custom_call.1} parent=1 // pred_region
      _
    $region13: #{tpu_custom_call.1} parent=1 // pred_fallthru
      _
    // Predicated region
    $region14: #{tpu_custom_call.1} parent=1 // pred_check
      _
    $region15: #{tpu_custom_call.1} parent=1 // pred_check_branch
      %41 = sbr.rel (0) target = $region17
    $region16: #{tpu_custom_call.1} parent=1 // pred_region
      %s43 = ssub.s32 512, 512
      %44 = vsyncadd [#allocation6], %s43
      %s45 = sshll.u32 [#allocation7], 4
      %s46 = int_to_ptr.vmem [resolvable:$true] %s45
      %51 = dma.hbm_to_vmem [thread:$0]  %s3, 512, %s46, [#allocation6], 128, 128, 8
    $region17: #{tpu_custom_call.1} parent=1 // pred_fallthru
      _
    // Predicated region
    $region18: #{tpu_custom_call.1} parent=1 // pred_check
      _
    $region19: #{tpu_custom_call.1} parent=1 // pred_check_branch
      %53 = sbr.rel (0) target = $region21
    $region20: #{tpu_custom_call.1} parent=1 // pred_region
      _
    $region21: #{tpu_custom_call.1} parent=1 // pred_fallthru
      _
    // Predicated region
    $region22: #{tpu_custom_call.1} parent=1 // pred_check
      _
    $region23: #{tpu_custom_call.1} parent=1 // pred_check_branch
      %55 = sbr.rel (0) target = $region25
    $region24: #{tpu_custom_call.1} parent=1 // pred_region
      _
    $region25: #{tpu_custom_call.1} parent=1 // pred_fallthru
      _
    // Predicated region
    $region26: #{tpu_custom_call.1} parent=1 // pred_check
      _
    $region27: #{tpu_custom_call.1} parent=1 // pred_check_branch
      %57 = sbr.rel (0) target = $region29
    $region28: #{tpu_custom_call.1} parent=1 // pred_region
      _
    $region29: #{tpu_custom_call.1} parent=1 // pred_fallthru
      _
    // Predicated region
    $region30: #{tpu_custom_call.1} parent=1 // pred_check
      _
    $region31: #{tpu_custom_call.1} parent=1 // pred_check_branch
      %59 = sbr.rel (0) target = $region33
    $region32: #{tpu_custom_call.1} parent=1 // pred_region
      %60 = dma.done [#allocation4], 128
    $region33: #{tpu_custom_call.1} parent=1 // pred_fallthru
      _
    // Predicated region
    $region34: #{tpu_custom_call.1} parent=1 // pred_check
      _
    $region35: #{tpu_custom_call.1} parent=1 // pred_check_branch
      %62 = sbr.rel (0) target = $region37
    $region36: #{tpu_custom_call.1} parent=1 // pred_region
      %63 = dma.done [#allocation6], 512
    $region37: #{tpu_custom_call.1} parent=1 // pred_fallthru
      _
    // Predicated region
    $region38: #{tpu_custom_call.1} parent=1 // pred_check
      _
    $region39: #{tpu_custom_call.1} parent=1 // pred_check_branch
      %65 = sbr.rel (0) target = $region41
    $region40: #{tpu_custom_call.1} parent=1 // pred_region
      %66 = dma.done [#allocation6], 512
    $region41: #{tpu_custom_call.1} parent=1 // pred_fallthru
      _
    %v67 = vld [vmem:[#allocation3] sm:$0xff]
    %v68 = vld [vmem:[#allocation5] sm:$0xff]
    %v69 = vld [vmem:[#allocation5 + $0x8] sm:$0xff]
    %v70 = vld [vmem:[#allocation5 + $0x10] sm:$0xff]
    %v71 = vld [vmem:[#allocation5 + $0x18] sm:$0xff]
    %v72 = vld [vmem:[%s2] sm:$0x1]
    %v74 = vlaneseq
    %v75 = vshrl.u32 %v74, 7
    %v76 = vsub.s32 0, %v75
    %v77 = vrot.slane %v72, %v76
    %vm79 = vcmask 261120
    %v81 = vsel %vm79, %v67, 0
    %83 = vmatprep.subr.mxu0 0.0
    %84 = vmatpush1.msra.mxu0 %v68
    %85 = vmatprep.subr.mxu0 0.0
    %86 = vmatpush1.msra.mxu0 %v69
    %87 = vmatprep.subr.mxu0 0.0
    %88 = vmatpush1.msra.mxu0 %v70
    %89 = vmatprep.subr.mxu0 0.0
    %90 = vmatpush1.msra.mxu0 %v71
    %91 = vmatprep.subr.mxu0 0.0
    %92 = vmatpush1.msra.mxu0 0.0
    %93 = vmatprep.subr.mxu0 0.0
    %94 = vmatpush1.msra.mxu0 0.0
    %95 = vmatprep.subr.mxu0 0.0
    %96 = vmatpush1.msra.mxu0 0.0
    %97 = vmatprep.subr.mxu0 0.0
    %98 = vmatpush1.msra.mxu0 0.0
    %99 = vmatprep.subr.mxu0 0.0
    %100 = vmatpush1.msra.mxu0 0.0
    %101 = vmatprep.subr.mxu0 0.0
    %102 = vmatpush1.msra.mxu0 0.0
    %103 = vmatprep.subr.mxu0 0.0
    %104 = vmatpush1.msra.mxu0 0.0
    %105 = vmatprep.subr.mxu0 0.0
    %106 = vmatpush1.msra.mxu0 0.0
    %107 = vmatprep.subr.mxu0 0.0
    %108 = vmatpush1.msra.mxu0 0.0
    %109 = vmatprep.subr.mxu0 0.0
    %110 = vmatpush1.msra.mxu0 0.0
    %111 = vmatprep.subr.mxu0 0.0
    %112 = vmatpush1.msra.mxu0 0.0
    %113 = vmatprep.subr.mxu0 0.0
    %114 = vmatpush1.msra.mxu0 0.0
    %115 = vmatprep.subr.mxu0 0.0
    %116 = vmatpush1.msra.mxu0 0.0
    %117 = vmatprep.subr.mxu0 0.0
    %118 = vmatpush1.msra.mxu0 0.0
    %119 = vmatprep.subr.mxu0 0.0
    %120 = vmatpush1.msra.mxu0 0.0
    %121 = vmatprep.subr.mxu0 0.0
    %122 = vmatpush1.msra.mxu0 0.0
    %123 = vmatprep.subr.mxu0 0.0
    %124 = vmatpush1.msra.mxu0 0.0
    %125 = vmatprep.subr.mxu0 0.0
    %126 = vmatpush1.msra.mxu0 0.0
    %127 = vmatprep.subr.mxu0 0.0
    %128 = vmatpush1.msra.mxu0 0.0
    %129 = vmatprep.subr.mxu0 0.0
    %130 = vmatpush1.msra.mxu0 0.0
    %131 = vmatprep.subr.mxu0 0.0
    %132 = vmatpush1.msra.mxu0 0.0
    %133 = vmatprep.subr.mxu0 0.0
    %134 = vmatpush1.msra.mxu0 0.0
    %135 = vmatprep.subr.mxu0 0.0
    %136 = vmatpush1.msra.mxu0 0.0
    %137 = vmatprep.subr.mxu0 0.0
    %138 = vmatpush1.msra.mxu0 0.0
    %139 = vmatprep.subr.mxu0 0.0
    %140 = vmatpush1.msra.mxu0 0.0
    %141 = vmatprep.subr.mxu0 0.0
    %142 = vmatpush1.msra.mxu0 0.0
    %143 = vmatprep.subr.mxu0 0.0
    %144 = vmatpush1.msra.mxu0 0.0
    %145 = vmatprep.subr.mxu0 0.0
    %146 = vmatpush1.msra.mxu0 0.0
    %147 = vmatprep.mubr.f32.mxu0 0.0
    %148 = vmatmul.mubr.f32.gmra.mrb[0].mxu0 %v81
    %v149 = vpop.f32.mrb[0].mxu0
    %v150 = vadd.f32 %v77, %v149
    %v151 = vpop.f32.mrb[0].mxu0
    %152 = vdwg.mxu0
    %v153 = vmax.f32 %v150, 0.0
    %v154 = vld [vmem:[#allocation7] sm:$0xff]
    %v155 = vld [vmem:[#allocation7 + $0x8] sm:$0xff]
    %v156 = vld [vmem:[#allocation7 + $0x10] sm:$0xff]
    %v157 = vld [vmem:[#allocation7 + $0x18] sm:$0xff]
    %v158 = vld [vmem:[%s4] sm:$0x1]
    %v160 = vlaneseq
    %v161 = vshrl.u32 %v160, 7
    %v162 = vsub.s32 0, %v161
    %v163 = vrot.slane %v158, %v162
    %v166 = vsel %vm79, %v153, 0
    %168 = vmatprep.subr.mxu0 0.0
    %169 = vmatpush1.msra.mxu0 %v154
    %170 = vmatprep.subr.mxu0 0.0
    %171 = vmatpush1.msra.mxu0 %v155
    %172 = vmatprep.subr.mxu0 0.0
    %173 = vmatpush1.msra.mxu0 %v156
    %174 = vmatprep.subr.mxu0 0.0
    %175 = vmatpush1.msra.mxu0 %v157
    %176 = vmatprep.subr.mxu0 0.0
    %177 = vmatpush1.msra.mxu0 0.0
    %178 = vmatprep.subr.mxu0 0.0
    %179 = vmatpush1.msra.mxu0 0.0
    %180 = vmatprep.subr.mxu0 0.0
    %181 = vmatpush1.msra.mxu0 0.0
    %182 = vmatprep.subr.mxu0 0.0
    %183 = vmatpush1.msra.mxu0 0.0
    %184 = vmatprep.subr.mxu0 0.0
    %185 = vmatpush1.msra.mxu0 0.0
    %186 = vmatprep.subr.mxu0 0.0
    %187 = vmatpush1.msra.mxu0 0.0
    %188 = vmatprep.subr.mxu0 0.0
    %189 = vmatpush1.msra.mxu0 0.0
    %190 = vmatprep.subr.mxu0 0.0
    %191 = vmatpush1.msra.mxu0 0.0
    %192 = vmatprep.subr.mxu0 0.0
    %193 = vmatpush1.msra.mxu0 0.0
    %194 = vmatprep.subr.mxu0 0.0
    %195 = vmatpush1.msra.mxu0 0.0
    %196 = vmatprep.subr.mxu0 0.0
    %197 = vmatpush1.msra.mxu0 0.0
    %198 = vmatprep.subr.mxu0 0.0
    %199 = vmatpush1.msra.mxu0 0.0
    %200 = vmatprep.subr.mxu0 0.0
    %201 = vmatpush1.msra.mxu0 0.0
    %202 = vmatprep.subr.mxu0 0.0
    %203 = vmatpush1.msra.mxu0 0.0
    %204 = vmatprep.subr.mxu0 0.0
    %205 = vmatpush1.msra.mxu0 0.0
    %206 = vmatprep.subr.mxu0 0.0
    %207 = vmatpush1.msra.mxu0 0.0
    %208 = vmatprep.subr.mxu0 0.0
    %209 = vmatpush1.msra.mxu0 0.0
    %210 = vmatprep.subr.mxu0 0.0
    %211 = vmatpush1.msra.mxu0 0.0
    %212 = vmatprep.subr.mxu0 0.0
    %213 = vmatpush1.msra.mxu0 0.0
    %214 = vmatprep.subr.mxu0 0.0
    %215 = vmatpush1.msra.mxu0 0.0
    %216 = vmatprep.subr.mxu0 0.0
    %217 = vmatpush1.msra.mxu0 0.0
    %218 = vmatprep.subr.mxu0 0.0
    %219 = vmatpush1.msra.mxu0 0.0
    %220 = vmatprep.subr.mxu0 0.0
    %221 = vmatpush1.msra.mxu0 0.0
    %222 = vmatprep.subr.mxu0 0.0
    %223 = vmatpush1.msra.mxu0 0.0
    %224 = vmatprep.subr.mxu0 0.0
    %225 = vmatpush1.msra.mxu0 0.0
    %226 = vmatprep.subr.mxu0 0.0
    %227 = vmatpush1.msra.mxu0 0.0
    %228 = vmatprep.subr.mxu0 0.0
    %229 = vmatpush1.msra.mxu0 0.0
    %230 = vmatprep.subr.mxu0 0.0
    %231 = vmatpush1.msra.mxu0 0.0
    %232 = vmatprep.mubr.f32.mxu0 0.0
    %233 = vmatmul.mubr.f32.gmra.mrb[0].mxu0 %v166
    %v234 = vpop.f32.mrb[0].mxu0
    %v235 = vadd.f32 %v163, %v234
    %v236 = vpop.f32.mrb[0].mxu0
    %237 = vdwg.mxu0
    %v238 = vmax.f32 %v235, 0.0
    %v239 = vld [vmem:[%s5] sm:$0x1]
    %v240 = vld [vmem:[#allocation2] sm:$0x1]
    %v242 = vlaneseq
    %v243 = vshrl.u32 %v242, 7
    %v244 = vsub.s32 0, %v243
    %v245 = vrot.slane %v239, %v244
    %v247 = vmul.f32 %v238, %v245
    %v248 = vsel %vm79, %v247, 0.0
    %249 = vadd.xlane.f32.xlu0 %v248
    %v250 = vpop.xlane.xlu0 %249
    %v252 = vlaneseq
    %v253 = vshrl.u32 %v252, 7
    %v254 = vsub.s32 0, %v253
    %v255 = vrot.slane %v240, %v254
    %v257 = vadd.f32 %v250, %v255
    %vm258 = vcmask 7168
    %259 = vst.msk [vmem:[%s7] sm:$0xff] %vm258, %v257
    // Predicated region
    $region42: #{tpu_custom_call.1} parent=1 // pred_check
      _
    $region43: #{tpu_custom_call.1} parent=1 // pred_check_branch
      %261 = sbr.rel (0) target = $region45
    $region44: #{tpu_custom_call.1} parent=1 // pred_region
      _
    $region45: #{tpu_custom_call.1} parent=1 // pred_fallthru
      _
    // Predicated region
    $region46: #{tpu_custom_call.1} parent=1 // pred_check
      _
    $region47: #{tpu_custom_call.1} parent=1 // pred_check_branch
      %263 = sbr.rel (0) target = $region49
    $region48: #{tpu_custom_call.1} parent=1 // pred_region
      _
    $region49: #{tpu_custom_call.1} parent=1 // pred_fallthru
      _
    %264 = vsyncpa [#allocation4], 1
    %265 = vsyncpa [#allocation6], 1

</llo_original>
